<compile_context>
chip_gen: v7x
topology: tpu7x:2x2x1
jax: 0.10.0
libtpu: 0.0.40
codegen_flags: <defaults>
</compile_context>

<pallas_src>
import functools

import jax
import jax.numpy as jnp
from jax.experimental import pallas as pl
from jax.experimental.pallas import tpu as pltpu


def weighted_dice_kernel(pred_ref, target_ref, w_ref, out_ref,
                         inter_acc, denom_acc, *, eps):
    # pred_ref / target_ref: (R, TILE_N) tile in VMEM (native dtype)
    # w_ref:                 (R, 1) per-row weight score[b]/(B*C), f32, resident
    # out_ref:               (1, 1) SMEM scalar result
    # inter_acc / denom_acc: (R, 1) f32 VMEM accumulators
    j = pl.program_id(0)

    @pl.when(j == 0)
    def _init():
        inter_acc[...] = jnp.zeros_like(inter_acc)
        denom_acc[...] = jnp.zeros_like(denom_acc)

    p = pred_ref[...].astype(jnp.float32)
    t = target_ref[...].astype(jnp.float32)
    # intersection partial and fused denominator partial (2 lane reductions).
    inter_acc[...] += jnp.sum(p * t, axis=-1, keepdims=True)
    denom_acc[...] += jnp.sum(p + t, axis=-1, keepdims=True)

    @pl.when(j == pl.num_programs(0) - 1)
    def _finalize():
        loss = 1.0 - 2.0 * inter_acc[...] / (denom_acc[...] + eps)   # (R, 1)
        # sum_r loss[r] * score[b(r)]/(B*C) == mean_b(score[b]*mean_c(loss[b,c]))
        out_ref[0, 0] = jnp.sum(loss * w_ref[...])


def weighted_dice_loss(pred, target, score, eps=1e-6):
    """Pallas equivalent of WeightedDiceLoss(weight=None).forward(pred, target, score)."""
    B, C = pred.shape[0], pred.shape[1]
    R = B * C

    # Keep native dtype (no fp32 up-cast in HBM); cast happens inside kernel.
    pred2 = pred.reshape(R, -1)
    target2 = target.reshape(R, -1)
    N = pred2.shape[-1]

    # ---- tile sizing: largest lane tile such that the double-buffered input
    # footprint (2 inputs x 2 buffers) stays within a conservative budget that
    # fits v5e/v6e/v7x scoped-VMEM limits we set explicitly below. -------------
    LANE = 128
    itemsize = max(jnp.dtype(pred2.dtype).itemsize,
                   jnp.dtype(target2.dtype).itemsize)
    n_pad128 = pl.cdiv(N, LANE) * LANE
    budget_bytes = 16 * 1024 * 1024                    # double-buffered inputs
    max_tile = budget_bytes // (4 * R * itemsize)      # 2 inputs x 2 buffers
    tile_n = max(LANE, (max_tile // LANE) * LANE)
    tile_n = min(tile_n, 4096, n_pad128)               # 512-4096 lanes is roofline zone

    # Zero-pad N so every tile is full (zeros don't change any of the sums).
    n_pad = pl.cdiv(N, tile_n) * tile_n
    if n_pad != N:
        pad = n_pad - N
        pred2 = jnp.pad(pred2, ((0, 0), (0, pad)))
        target2 = jnp.pad(target2, ((0, 0), (0, pad)))

    # Per-row weight: score[b] / (B*C) for row r = b*C + c.
    w = score.astype(jnp.float32).reshape(B, 1) / float(B * C)
    w = jnp.broadcast_to(w, (B, C)).reshape(R, 1)

    grid = (n_pad // tile_n,)
    kernel = functools.partial(weighted_dice_kernel, eps=eps)

    out = pl.pallas_call(
        kernel,
        out_shape=jax.ShapeDtypeStruct((1, 1), jnp.float32),
        grid_spec=pltpu.PrefetchScalarGridSpec(
            num_scalar_prefetch=0,
            grid=grid,
            in_specs=[
                pl.BlockSpec((R, tile_n), lambda j: (0, j)),
                pl.BlockSpec((R, tile_n), lambda j: (0, j)),
                pl.BlockSpec((R, 1), lambda j: (0, 0)),   # resident across grid
            ],
            out_specs=pl.BlockSpec((1, 1), lambda j: (0, 0),
                                   memory_space=pltpu.MemorySpace.SMEM),
            scratch_shapes=[
                pltpu.VMEM((R, 1), jnp.float32),          # intersection acc
                pltpu.VMEM((R, 1), jnp.float32),          # denominator acc
            ],
        ),
        compiler_params=pltpu.CompilerParams(
            dimension_semantics=("arbitrary",),           # reduction axis
            vmem_limit_bytes=32 * 1024 * 1024,
        ),
    )(pred2, target2, w)
    return out[0, 0]


def _reference(pred, target, score, eps=1e-6):
    B, C = pred.shape[0], pred.shape[1]
    p = pred.reshape(B, C, -1).astype(jnp.float32)
    t = target.reshape(B, C, -1).astype(jnp.float32)
    inter = jnp.sum(p * t, axis=-1)
    den = jnp.sum(p, axis=-1) + jnp.sum(t, axis=-1)
    loss = 1.0 - 2.0 * inter / (den + eps)
    loss = jnp.mean(loss, axis=1)
    return jnp.mean(loss * score.astype(jnp.float32))


if __name__ == "__main__":
    key = jax.random.PRNGKey(0)
    k1, k2, k3 = jax.random.split(key, 3)

    B, C, H, W = 2, 4, 16, 16
    pred = jax.nn.sigmoid(jax.random.normal(k1, (B, C, H, W), dtype=jnp.float32))
    target = (jax.random.uniform(k2, (B, C, H, W)) > 0.5).astype(jnp.float32)
    score = jax.random.uniform(k3, (B,), dtype=jnp.float32)

    out = weighted_dice_loss(pred, target, score)
    out = jax.block_until_ready(out)

    ref = _reference(pred, target, score)
    if not jnp.allclose(out, ref, atol=1e-5, rtol=1e-5):
        raise AssertionError(f"mismatch: kernel={out} ref={ref}")

    print("KERNEL_OK")
</pallas_src>

<mosaic_0001>
module attributes {stable_mosaic.version = 11 : i64} {
  func.func @weighted_dice_kernel(%arg0: i32, %arg1: memref<8x256xf32, #tpu.memory_space<vmem>>, %arg2: memref<8x256xf32, #tpu.memory_space<vmem>>, %arg3: memref<8x1xf32, #tpu.memory_space<vmem>>, %arg4: memref<1x1xf32, #tpu.memory_space<smem>>, %arg5: memref<8x1xf32, #tpu.memory_space<vmem>>, %arg6: memref<8x1xf32, #tpu.memory_space<vmem>>) attributes {dimension_semantics = [#tpu.dimension_semantics<arbitrary>], iteration_bounds = array<i64: 1>, scalar_prefetch = 0 : i64, scratch_operands = 2 : i64, tpu.core_type = #tpu.core_type<tc>, window_params = [{transform_indices = @transform_0, window_bounds = array<i64: 8, 256>}, {transform_indices = @transform_1, window_bounds = array<i64: 8, 256>}, {pipeline_mode = #tpu.pipeline_mode<synchronous>, transform_indices = @transform_2, window_bounds = array<i64: 8, 1>}, {transform_indices = @transform_3, window_bounds = array<i64: 1, 1>}]} {
    %c0_i32 = arith.constant 0 : i32
    %0 = arith.cmpi eq, %arg0, %c0_i32 : i32
    %1 = arith.extui %0 : i1 to i32
    %c0_i32_0 = arith.constant 0 : i32
    %2 = arith.cmpi ne, %1, %c0_i32_0 : i32
    scf.if %2 {
      %cst_15 = arith.constant 0.000000e+00 : f32
      %20 = vector.broadcast %cst_15 : f32 to vector<8x1xf32>
      %c0_16 = arith.constant 0 : index
      %c0_17 = arith.constant 0 : index
      %21 = vector.load %arg5[%c0_16, %c0_17] : memref<8x1xf32, #tpu.memory_space<vmem>>, vector<8x1xf32>
      tpu.vector_store %arg5[%c0_16, %c0_17], %20 {strides = array<i32>} : memref<8x1xf32, #tpu.memory_space<vmem>>, vector<8x1xf32>,
      %cst_18 = arith.constant 0.000000e+00 : f32
      %22 = vector.broadcast %cst_18 : f32 to vector<8x1xf32>
      %c0_19 = arith.constant 0 : index
      %c0_20 = arith.constant 0 : index
      %23 = vector.load %arg6[%c0_19, %c0_20] : memref<8x1xf32, #tpu.memory_space<vmem>>, vector<8x1xf32>
      tpu.vector_store %arg6[%c0_19, %c0_20], %22 {strides = array<i32>} : memref<8x1xf32, #tpu.memory_space<vmem>>, vector<8x1xf32>,
    } else {
    }
    %c0 = arith.constant 0 : index
    %c0_1 = arith.constant 0 : index
    %3 = vector.load %arg1[%c0, %c0_1] : memref<8x256xf32, #tpu.memory_space<vmem>>, vector<8x256xf32>
    %c0_2 = arith.constant 0 : index
    %c0_3 = arith.constant 0 : index
    %4 = vector.load %arg2[%c0_2, %c0_3] : memref<8x256xf32, #tpu.memory_space<vmem>>, vector<8x256xf32>
    %c0_4 = arith.constant 0 : index
    %c0_5 = arith.constant 0 : index
    %5 = vector.load %arg5[%c0_4, %c0_5] : memref<8x1xf32, #tpu.memory_space<vmem>>, vector<8x1xf32>
    %6 = arith.mulf %3, %4 : vector<8x256xf32>
    %cst = arith.constant dense<0.000000e+00> : vector<8xf32>
    %7 = vector.multi_reduction <add>, %6, %cst [1] : vector<8x256xf32> to vector<8xf32>
    %8 = vector.shape_cast %7 : vector<8xf32> to vector<8x1xf32>
    %9 = arith.addf %5, %8 : vector<8x1xf32>
    %c0_6 = arith.constant 0 : index
    %c0_7 = arith.constant 0 : index
    %10 = vector.load %arg5[%c0_6, %c0_7] : memref<8x1xf32, #tpu.memory_space<vmem>>, vector<8x1xf32>
    tpu.vector_store %arg5[%c0_6, %c0_7], %9 {strides = array<i32>} : memref<8x1xf32, #tpu.memory_space<vmem>>, vector<8x1xf32>,
    %c0_8 = arith.constant 0 : index
    %c0_9 = arith.constant 0 : index
    %11 = vector.load %arg6[%c0_8, %c0_9] : memref<8x1xf32, #tpu.memory_space<vmem>>, vector<8x1xf32>
    %12 = arith.addf %3, %4 : vector<8x256xf32>
    %cst_10 = arith.constant dense<0.000000e+00> : vector<8xf32>
    %13 = vector.multi_reduction <add>, %12, %cst_10 [1] : vector<8x256xf32> to vector<8xf32>
    %14 = vector.shape_cast %13 : vector<8xf32> to vector<8x1xf32>
    %15 = arith.addf %11, %14 : vector<8x1xf32>
    %c0_11 = arith.constant 0 : index
    %c0_12 = arith.constant 0 : index
    %16 = vector.load %arg6[%c0_11, %c0_12] : memref<8x1xf32, #tpu.memory_space<vmem>>, vector<8x1xf32>
    tpu.vector_store %arg6[%c0_11, %c0_12], %15 {strides = array<i32>} : memref<8x1xf32, #tpu.memory_space<vmem>>, vector<8x1xf32>,
    %c0_i32_13 = arith.constant 0 : i32
    %17 = arith.cmpi eq, %arg0, %c0_i32_13 : i32
    %18 = arith.extui %17 : i1 to i32
    %c0_i32_14 = arith.constant 0 : i32
    %19 = arith.cmpi ne, %18, %c0_i32_14 : i32
    scf.if %19 {
      %c0_15 = arith.constant 0 : index
      %c0_16 = arith.constant 0 : index
      %20 = vector.load %arg5[%c0_15, %c0_16] : memref<8x1xf32, #tpu.memory_space<vmem>>, vector<8x1xf32>
      %cst_17 = arith.constant 2.000000e+00 : f32
      %21 = vector.broadcast %cst_17 : f32 to vector<8x1xf32>
      %22 = arith.mulf %21, %20 : vector<8x1xf32>
      %c0_18 = arith.constant 0 : index
      %c0_19 = arith.constant 0 : index
      %23 = vector.load %arg6[%c0_18, %c0_19] : memref<8x1xf32, #tpu.memory_space<vmem>>, vector<8x1xf32>
      %cst_20 = arith.constant 9.99999997E-7 : f32
      %24 = vector.broadcast %cst_20 : f32 to vector<8x1xf32>
      %25 = arith.addf %23, %24 : vector<8x1xf32>
      %26 = arith.divf %22, %25 : vector<8x1xf32>
      %cst_21 = arith.constant 1.000000e+00 : f32
      %27 = vector.broadcast %cst_21 : f32 to vector<8x1xf32>
      %28 = arith.subf %27, %26 : vector<8x1xf32>
      %c0_22 = arith.constant 0 : index
      %c0_23 = arith.constant 0 : index
      %29 = vector.load %arg3[%c0_22, %c0_23] : memref<8x1xf32, #tpu.memory_space<vmem>>, vector<8x1xf32>
      %30 = arith.mulf %28, %29 : vector<8x1xf32>
      %31 = vector.shape_cast %30 : vector<8x1xf32> to vector<1x8x1xf32>
      %cst_24 = arith.constant dense<0.000000e+00> : vector<1xf32>
      %32 = vector.multi_reduction <add>, %31, %cst_24 [1, 2] : vector<1x8x1xf32> to vector<1xf32>
      %33 = vector.shape_cast %32 : vector<1xf32> to vector<1x1x1xf32>
      %34 = vector.extract %33[0, 0, 0] : f32 from vector<1x1x1xf32>
      %c0_25 = arith.constant 0 : index
      %c0_26 = arith.constant 0 : index
      %35 = memref.load %arg4[%c0_25, %c0_26] : memref<1x1xf32, #tpu.memory_space<smem>>
      memref.store %34, %arg4[%c0_25, %c0_26] : memref<1x1xf32, #tpu.memory_space<smem>>
    } else {
    }
    return
  }
  func.func @transform_0(%arg0: i32) -> (i32, i32) {
    %c0_i32 = arith.constant 0 : i32
    %c0_i32_0 = arith.constant 0 : i32
    return %c0_i32, %arg0 : i32, i32
  }
  func.func @transform_1(%arg0: i32) -> (i32, i32) {
    %c0_i32 = arith.constant 0 : i32
    %c0_i32_0 = arith.constant 0 : i32
    return %c0_i32, %arg0 : i32, i32
  }
  func.func @transform_2(%arg0: i32) -> (i32, i32) {
    %c0_i32 = arith.constant 0 : i32
    %c0_i32_0 = arith.constant 0 : i32
    %c0_i32_1 = arith.constant 0 : i32
    return %c0_i32, %c0_i32_0 : i32, i32
  }
  func.func @transform_3(%arg0: i32) -> (i32, i32) {
    %c0_i32 = arith.constant 0 : i32
    %c0_i32_0 = arith.constant 0 : i32
    %c0_i32_1 = arith.constant 0 : i32
    return %c0_i32, %c0_i32_0 : i32, i32
  }
}

</mosaic_0001>

<llo_original>
// kernel: tpu_custom_call.1
$region0: #{tpu_custom_call.1}
  #allocation0 [shape = 'u32[]', space=smem, size = 0x4, offset = 0x4, fixed_abs, tag = 'smem constant byte address 0x4 - core index']
  #allocation1 [shape = 'u32[144,128]{1,0:T(1,128)}', space=vmem, size = 0x12000, scoped, tag = 'internal scratch']
  #allocation2 [shape = 'f32[8,1]{1,0:T(8,128)}', space=vmem, size = 0x1000, scoped, tag = 'scratch operand']
  #allocation3 [shape = 'f32[8,1]{1,0:T(8,128)}', space=vmem, size = 0x1000, scoped, tag = 'scratch operand']
  %s0 = inlined_call_operand.hbm [shape: f32[8,256], index: 0, kind: input, shape index: {}]
  %s1 = inlined_call_operand.hbm [shape: f32[8,256], index: 1, kind: input, shape index: {}]
  %s2 = inlined_call_operand.vmem [shape: f32[8,1], index: 2, kind: input, shape index: {}]
  %s3 = inlined_call_operand.hbm [shape: f32[1,1], index: 3, kind: output, shape index: {}]
  %s4 = sld [smem:[#allocation0]]
  $region38: #{tpu_custom_call.1} parent=0
    _
  %s6 = ssub.s32 1, %s4
  %s7 = scalar_select 0, %s6, %s4
  $region1: #{tpu_custom_call.1} parent=0
    #allocation4 [shape = 'u8[8192]{0}', space=vmem, size = 0x2000, scoped, tag = 'input window, operand 0, single buffered']
    #allocation5 [shape = 's32[1]{0}', space=sflag, size = 0x4, scoped, tag = 'scoped memory for tpu_custom_call.1']
    #allocation6 [shape = 's32[1]{0}', space=sflag, size = 0x4, scoped, tag = 'scoped memory for tpu_custom_call.1']
    #allocation7 [shape = 'u8[8192]{0}', space=vmem, size = 0x2000, scoped, tag = 'input window, operand 1, single buffered']
    #allocation8 [shape = 's32[1]{0}', space=sflag, size = 0x4, scoped, tag = 'scoped memory for tpu_custom_call.1']
    #allocation9 [shape = 'u8[512]{0}', space=smem, size = 0x200, scoped, tag = 'output window, operand 0, single buffered']
    %8 = vsyncpa [#allocation5], 0
    %9 = vsyncpa [#allocation8], 0
    %10 = vsyncpa [#allocation6], 0
    // Predicated region
    $region2: #{tpu_custom_call.1} parent=1 // pred_check
      _
    $region3: #{tpu_custom_call.1} parent=1 // pred_check_branch
      %12 = sbr.rel (0) target = $region5
    $region4: #{tpu_custom_call.1} parent=1 // pred_region
      %s14 = ssub.s32 256, 256
      %15 = vsyncadd [#allocation5], %s14
      %s17 = sshll.u32 [#allocation4], 4
      %s18 = int_to_ptr.vmem [resolvable:$true] %s17
      %20 = dma.hbm_to_vmem [thread:$0]  %s0, 256, %s18, [#allocation5]
    $region5: #{tpu_custom_call.1} parent=1 // pred_fallthru
      _
    // Predicated region
    $region6: #{tpu_custom_call.1} parent=1 // pred_check
      _
    $region7: #{tpu_custom_call.1} parent=1 // pred_check_branch
      %22 = sbr.rel (0) target = $region9
    $region8: #{tpu_custom_call.1} parent=1 // pred_region
      %s24 = ssub.s32 256, 256
      %25 = vsyncadd [#allocation8], %s24
      %s27 = sshll.u32 [#allocation7], 4
      %s28 = int_to_ptr.vmem [resolvable:$true] %s27
      %30 = dma.hbm_to_vmem [thread:$0]  %s1, 256, %s28, [#allocation8]
    $region9: #{tpu_custom_call.1} parent=1 // pred_fallthru
      _
    // Predicated region
    $region10: #{tpu_custom_call.1} parent=1 // pred_check
      _
    $region11: #{tpu_custom_call.1} parent=1 // pred_check_branch
      %32 = sbr.rel (0) target = $region13
    $region12: #{tpu_custom_call.1} parent=1 // pred_region
      _
    $region13: #{tpu_custom_call.1} parent=1 // pred_fallthru
      _
    // Predicated region
    $region14: #{tpu_custom_call.1} parent=1 // pred_check
      _
    $region15: #{tpu_custom_call.1} parent=1 // pred_check_branch
      %34 = sbr.rel (0) target = $region17
    $region16: #{tpu_custom_call.1} parent=1 // pred_region
      %35 = dma.done [#allocation5], 256
    $region17: #{tpu_custom_call.1} parent=1 // pred_fallthru
      _
    // Predicated region
    $region18: #{tpu_custom_call.1} parent=1 // pred_check
      _
    $region19: #{tpu_custom_call.1} parent=1 // pred_check_branch
      %37 = sbr.rel (0) target = $region21
    $region20: #{tpu_custom_call.1} parent=1 // pred_region
      %38 = dma.done [#allocation8], 256
    $region21: #{tpu_custom_call.1} parent=1 // pred_fallthru
      _
    %p39 = scmp.eq.s32.totalorder 0, 0
    // Predicated region
    $region22: #{tpu_custom_call.1} parent=1 // pred_check
      %p40 = pneg %p39
    $region23: #{tpu_custom_call.1} parent=1 // pred_check_branch
      %42 = sbr.rel (%p40) target = $region25
    $region24: #{tpu_custom_call.1} parent=1 // pred_region
      %vm43 = vcmask 7168
      %44 = vst.msk [vmem:[#allocation2] sm:$0xff] %vm43, 0.0
      %45 = vst.msk [vmem:[#allocation3] sm:$0xff] %vm43, 0.0
    $region25: #{tpu_custom_call.1} parent=1 // pred_fallthru
      _
    %v46 = vld [vmem:[#allocation4] sm:$0xff]
    %v47 = vld [vmem:[#allocation4 + $0x8] sm:$0xff]
    %v48 = vld [vmem:[#allocation7] sm:$0xff]
    %v49 = vld [vmem:[#allocation7 + $0x8] sm:$0xff]
    %v50 = vld [vmem:[#allocation2] sm:$0xff]
    %v51 = vmul.f32 %v46, %v48
    %v52 = vmul.f32 %v47, %v49
    %v53 = vadd.f32 %v51, %v52
    %54 = vadd.xlane.f32.xlu0 %v53
    %v55 = vpop.xlane.xlu0 %54
    %v56 = vadd.f32 %v50, %v55
    %vm57 = vcmask 7168
    %58 = vst.msk [vmem:[#allocation2] sm:$0xff] %vm57, %v56
    %v59 = vld [vmem:[#allocation3] sm:$0xff]
    %v60 = vadd.f32 %v46, %v48
    %v61 = vadd.f32 %v47, %v49
    %v62 = vadd.f32 %v60, %v61
    %63 = vadd.xlane.f32.xlu0 %v62
    %v64 = vpop.xlane.xlu0 %63
    %v65 = vadd.f32 %v59, %v64
    %66 = vst.msk [vmem:[#allocation3] sm:$0xff] %vm57, %v65
    // Predicated region
    $region26: #{tpu_custom_call.1} parent=1 // pred_check
      %p67 = pneg %p39
    $region27: #{tpu_custom_call.1} parent=1 // pred_check_branch
      %69 = sbr.rel (%p67) target = $region29
    $region28: #{tpu_custom_call.1} parent=1 // pred_region
      %v70 = vld [vmem:[#allocation2] sm:$0xff]
      %v71 = vmul.f32 %v70, 2.0
      %v72 = vld [vmem:[#allocation3] sm:$0xff]
      %v73 = vadd.f32 %v72, 1e-06
      %v74 = vrcp.pop %v73
      %v75 = vmul.f32 %v71, %v74
      %v76 = vsub.f32 1.0, %v75
      %v77 = vld [vmem:[%s2] sm:$0xff]
      %v78 = vmul.f32 %v76, %v77
      %v79 = vsel %vm57, %v78, 0.0
      %80 = vadd.xlane.f32.xlu0 %v79
      %v81 = vpop.xlane.xlu0 %80
      %v82 = vrot.slane %v81, 4
      %v83 = vadd.f32 %v81, %v82
      %v84 = vrot.slane %v83, 2
      %v85 = vadd.f32 %v83, %v84
      %v86 = vrot.slane %v85, 1
      %v87 = vadd.f32 %v85, %v86
      %s88 = vtos %v87
      %s89 = scalar_lea.smem [#allocation9], 0
      %90 = sst [smem:[%s89]] %s88
    $region29: #{tpu_custom_call.1} parent=1 // pred_fallthru
      _
    // Predicated region
    $region30: #{tpu_custom_call.1} parent=1 // pred_check
      _
    $region31: #{tpu_custom_call.1} parent=1 // pred_check_branch
      %92 = sbr.rel (0) target = $region33
    $region32: #{tpu_custom_call.1} parent=1 // pred_region
      %s94 = ssub.s32 16, 16
      %95 = vsyncadd [#allocation6], %s94
      %98 = dma.smem_to_hbm [#allocation9], 16, %s3, [#allocation6]
    $region33: #{tpu_custom_call.1} parent=1 // pred_fallthru
      _
    // Predicated region
    $region34: #{tpu_custom_call.1} parent=1 // pred_check
      _
    $region35: #{tpu_custom_call.1} parent=1 // pred_check_branch
      %100 = sbr.rel (0) target = $region37
    $region36: #{tpu_custom_call.1} parent=1 // pred_region
      %101 = dma.done [#allocation6], 16
    $region37: #{tpu_custom_call.1} parent=1 // pred_fallthru
      _
    %102 = sfence
    %103 = vsyncpa [#allocation5], 1
    %104 = vsyncpa [#allocation8], 1
    %105 = vsyncpa [#allocation6], 1

</llo_original>
